<compile_context>
chip_gen: v5e
topology: v5e:2x2
jax: 0.10.0
libtpu: 0.0.40
codegen_flags: <defaults>
</compile_context>

<pallas_src>
import functools
import numpy as np
import jax
import jax.numpy as jnp
from jax.experimental import pallas as pl
from jax.experimental.pallas import tpu as pltpu

LANES = 128


def _round_up(x, m):
    return (x + m - 1) // m * m


# ------------------------------ fused kernel --------------------------------


def _gcn2_fused_kernel(graph_ref, h_ref, inter_ref, w_ref, vec_ref, out_ref,
                       *, head, hid, n, num_g, out_rows):
    f32 = jnp.float32
    hh = head * hid
    L = LANES
    dot = functools.partial(jnp.dot, preferred_element_type=f32)

    # ---- graph-structure slab (built once per graph batch; one DMA) ---------
    Ahat        = graph_ref[0:n, 0:n]                             # (N,N)
    member_sum  = graph_ref[0:num_g, L:L + n]                     # (G,N) 1/0 membership
    member_mean = graph_ref[8:8 + num_g, L:L + n]                 # (G,N) membership / |graph|
    mt          = graph_ref[0:n, 2 * L:2 * L + num_g]             # (N,G) member.T
    mt_tiled    = graph_ref[0:n, 3 * L:3 * L + num_g * head]      # (N,G*head)
    r_mask      = graph_ref[0:head, 4 * L:4 * L + num_g * head]   # head -> (head,graph)
    rsum_mask   = graph_ref[0:num_g * head, 5 * L:5 * L + head]   # (head,graph) -> head

    # ---- weight slab (128-lane aligned groups; one DMA) ---------------------
    wqv    = w_ref[0:hid, 0:2 * hh]               # [Wq | Wv]      (hid, 2*head*hid)
    wk_pad = w_ref[0:hid, L:L + 2 * hh]           # [Wk | 0]       (hid, 2*head*hid)
    cw_pad = w_ref[0:2 * hh, 2 * L:2 * L + hid]   # [0 ; Wconcat]  (2*head*hid, hid)
    ff1_w  = w_ref[0:hid, 3 * L:3 * L + 2 * hid]
    ff2_w  = w_ref[0:2 * hid, 4 * L:4 * L + hid]
    c1w    = w_ref[0:hid, 5 * L:5 * L + hid]      # eval-BN folded GraphConv weights
    c2w    = w_ref[0:hid, 6 * L:6 * L + hid]
    s_mask = w_ref[0:2 * hh, 7 * L:7 * L + head]  # per-head qk lane-sum mask
    e_mask = w_ref[0:head, 8 * L:8 * L + 2 * hh]  # per-head alpha -> v-lane expand mask

    # ---- small vectors packed one per sublane row (one DMA) -----------------
    vec = vec_ref[...]
    c1b = vec[0:1, 0:hid]
    c2b = vec[1:2, 0:hid]
    f1b = vec[2:3, 0:2 * hid]
    f2b = vec[3:4, 0:hid]
    lng = vec[4:5, 0:hid]
    lnb = vec[5:6, 0:hid]

    h0 = h_ref[...]                                               # (N, hid)

    # ---- dgl.mean_nodes(g, 'h') ----------------------------------------------
    init = dot(member_mean, h0)                                   # (G, hid)

    # ---- residual GraphConv blocks (eval BN folded; dropout = identity) ------
    def conv_block(x, w, b):
        return x + jnp.maximum(dot(dot(Ahat, x), w) + b, 0.0)

    residue_h = conv_block(conv_block(h0, c1w, c1b), c2w, c2b)    # (N, hid)

    # ---- dgl.broadcast_nodes(g, inter_f) --------------------------------------
    inter_h = dot(mt, inter_ref[...])                             # (N, hid)

    # ---- transformer_block: all heads vectorized -------------------------------
    qv = dot(residue_h, wqv)       # (N, 2*hh): q lanes [0,hh), v lanes [hh,2hh)
    k_pad = dot(inter_h, wk_pad)   # (N, 2*hh): k lanes [0,hh), zeros after
    att = dot(qv * k_pad, s_mask)  # (N, head): per-head per-node score

    # dgl.softmax_nodes: per-graph softmax over nodes, all heads at once.
    # NOTE: -1e30 sentinel assumes non-empty graphs (empty graph column -> 0/0).
    att_g = dot(att, r_mask)                                      # (N, G*head)
    masked = jnp.where(mt_tiled > 0.0, att_g, jnp.float32(-1e30))
    gmax = jnp.max(masked, axis=0, keepdims=True)                 # (1, G*head)
    node_max = dot(mt_tiled * gmax, rsum_mask)                    # (N, head)
    e = jnp.exp(att - node_max)                                   # (N, head)
    node_sum = dot(mt, dot(member_sum, e))                        # (N, head)
    inv = pl.reciprocal(node_sum, approx=True)                    # EUP
    inv = inv * (2.0 - node_sum * inv)                            # one Newton step
    alpha = e * inv                                               # (N, head)

    # v*alpha per head + concat + concat_trans, without any lane slicing:
    # alpha is broadcast onto the v lanes of qv via the e_mask matmul; the q lanes
    # are zeroed by the mask, so cw_pad (zero rows for the q half) gives the exact
    # concat-projection.
    multi = dot(qv * dot(alpha, e_mask), cw_pad)                  # (N, hid)

    def layernorm(x):                 # same LayerNorm instance reused twice
        mu = jnp.mean(x, axis=1, keepdims=True)
        var = jnp.mean((x - mu) ** 2, axis=1, keepdims=True)
        return (x - mu) * jax.lax.rsqrt(var + 1e-5) * lng + lnb

    x = layernorm(multi + residue_h)
    ff = jnp.maximum(dot(x, ff1_w) + f1b, 0.0)
    hg = layernorm(dot(ff, ff2_w) + f2b + x)

    # ---- outputs packed into a single lane-dense slab --------------------------
    out_ref[...] = jnp.zeros((out_rows, LANES), f32)
    out_ref[0:num_g, 0:hid] = dot(member_sum, hg)                 # sum_nodes readout
    out_ref[num_g:2 * num_g, 0:hid] = init                        # mean_nodes
    out_ref[2 * num_g:2 * num_g + n, 0:1] = alpha[:, head - 1:head]  # last head's alpha


# ------------------------------ wrapper --------------------------------------


def _full_spec(shape):
    nd = len(shape)
    return pl.BlockSpec(shape, lambda i, _nd=nd: (0,) * _nd)


def gcn2_forward(graph_slab, w_slab, vec_slab, h, inter_f, *, head):
    n, hid = h.shape
    num_g = inter_f.shape[0]
    hh = head * hid
    out_rows = _round_up(2 * num_g + n, 8)

    kernel = functools.partial(_gcn2_fused_kernel, head=head, hid=hid, n=n,
                               num_g=num_g, out_rows=out_rows)
    inputs = (graph_slab, h, inter_f, w_slab, vec_slab)

    bytes_accessed = sum(int(np.prod(a.shape)) * 4 for a in inputs) + out_rows * LANES * 4
    flops = 2 * (num_g * n * hid                       # mean_nodes
                 + 2 * (n * n * hid + n * hid * hid)   # two GraphConv blocks
                 + n * num_g * hid                     # broadcast_nodes
                 + 2 * n * hid * 2 * hh                # qv + k projections
                 + n * 2 * hh * head                   # att reduce
                 + n * head * 2 * hh                   # alpha expand
                 + n * 2 * hh * hid                    # concat_trans
                 + n * hid * 2 * hid + n * 2 * hid * hid   # FFN
                 + num_g * n * hid)                    # sum_nodes readout
    transcendentals = n * head * 2 + 2 * n             # exp + recip + rsqrt (rough)

    out = pl.pallas_call(
        kernel,
        grid=(1,),
        in_specs=[_full_spec(a.shape) for a in inputs],
        out_specs=_full_spec((out_rows, LANES)),
        out_shape=jax.ShapeDtypeStruct((out_rows, LANES), jnp.float32),
        compiler_params=pltpu.CompilerParams(dimension_semantics=("arbitrary",)),
        cost_estimate=pl.CostEstimate(flops=flops, transcendentals=transcendentals,
                                      bytes_accessed=bytes_accessed),
    )(*inputs)

    readout = out[0:num_g, 0:hid]
    init_avg_h = out[num_g:2 * num_g, 0:hid]
    att = out[2 * num_g:2 * num_g + n, 0:1]
    return readout, init_avg_h, att


# ------------------------------ parameter / slab prep --------------------------


def init_params(key, hid, head):
    keys = iter(jax.random.split(key, 16))

    def W(shape):
        return jax.random.normal(next(keys), shape, jnp.float32) * 0.1

    # weights stored directly in (in_dim, out_dim) "math" orientation
    return {
        'conv1_w': W((hid, hid)), 'conv1_b': W((1, hid)),
        'conv2_w': W((hid, hid)), 'conv2_b': W((1, hid)),
        'wq': W((hid, head * hid)), 'wk': W((hid, head * hid)), 'wv': W((hid, head * hid)),
        'concat_w': W((head * hid, hid)),
        'ff1_w': W((hid, 2 * hid)), 'ff1_b': W((1, 2 * hid)),
        'ff2_w': W((2 * hid, hid)), 'ff2_b': W((1, hid)),
        'ln_g': jnp.ones((1, hid), jnp.float32), 'ln_b': jnp.zeros((1, hid), jnp.float32),
    }


def pack_weight_slab(p, hid, head):
    hh = head * hid
    assert 2 * hh <= LANES and 2 * hid <= LANES
    # eval-mode BatchNorm1d (running mean=0, var=1, gamma=1, beta=0) folds to a scalar
    # scale on the GraphConv weights; the shift term is identically zero and dropped.
    bn_scale = 1.0 / np.sqrt(1.0 + 1e-5)

    rows = _round_up(max(2 * hh, 2 * hid, hid, head), 8)
    slab = np.zeros((rows, 9 * LANES), np.float32)

    def put(group, arr):
        arr = np.asarray(arr, np.float32)
        r, c = arr.shape
        slab[0:r, group * LANES:group * LANES + c] = arr

    put(0, np.concatenate([np.asarray(p['wq']), np.asarray(p['wv'])], axis=1))  # wqv
    put(1, p['wk'])                                                             # wk_pad
    cw_pad = np.zeros((2 * hh, hid), np.float32)
    cw_pad[hh:, :] = np.asarray(p['concat_w'])
    put(2, cw_pad)
    put(3, p['ff1_w'])
    put(4, p['ff2_w'])
    put(5, bn_scale * np.asarray(p['conv1_w']))
    put(6, bn_scale * np.asarray(p['conv2_w']))
    # block-diagonal head masks (MXU-side head reduce / expand)
    l = np.arange(2 * hh)
    hsel = np.arange(head)
    s_mask = ((l[:, None] >= hsel[None, :] * hid)
              & (l[:, None] < (hsel[None, :] + 1) * hid)).astype(np.float32)
    e_mask = ((l[None, :] >= hh + hsel[:, None] * hid)
              & (l[None, :] < hh + (hsel[:, None] + 1) * hid)).astype(np.float32)
    put(7, s_mask)
    put(8, e_mask)
    return jnp.asarray(slab)


def pack_vector_slab(p, hid):
    assert 2 * hid <= LANES
    slab = np.zeros((8, LANES), np.float32)
    slab[0, 0:hid] = np.asarray(p['conv1_b']).reshape(-1)
    slab[1, 0:hid] = np.asarray(p['conv2_b']).reshape(-1)
    slab[2, 0:2 * hid] = np.asarray(p['ff1_b']).reshape(-1)
    slab[3, 0:hid] = np.asarray(p['ff2_b']).reshape(-1)
    slab[4, 0:hid] = np.asarray(p['ln_g']).reshape(-1)
    slab[5, 0:hid] = np.asarray(p['ln_b']).reshape(-1)
    return jnp.asarray(slab)


def pack_graph_slab(Ahat, member, head):
    # Batch-constant graph structure packed once per graph batch (DGL-graph stand-in);
    # also hoists the mean-node scaling and head-tiled masks out of the kernel.
    Ahat = np.asarray(Ahat, np.float32)
    member = np.asarray(member, np.float32)
    g, n = member.shape
    assert n <= LANES and g <= 8 and g * head <= LANES
    counts = member.sum(axis=1, keepdims=True)
    member_mean = member / np.maximum(counts, 1.0)
    mt = member.T                                   # (N, G)
    mt_tiled = np.tile(mt, (1, head))               # (N, G*head), column c -> head c//G, graph c%G
    hsel = np.arange(head)
    col = np.arange(g * head)
    r_mask = (col[None, :] // g == hsel[:, None]).astype(np.float32)     # (head, G*head)
    rsum_mask = (col[:, None] // g == hsel[None, :]).astype(np.float32)  # (G*head, head)

    rows = _round_up(max(n, 8 + g, g * head), 8)
    slab = np.zeros((rows, 6 * LANES), np.float32)
    slab[0:n, 0:n] = Ahat
    slab[0:g, LANES:LANES + n] = member
    slab[8:8 + g, LANES:LANES + n] = member_mean
    slab[0:n, 2 * LANES:2 * LANES + g] = mt
    slab[0:n, 3 * LANES:3 * LANES + g * head] = mt_tiled
    slab[0:head, 4 * LANES:4 * LANES + g * head] = r_mask
    slab[0:g * head, 5 * LANES:5 * LANES + head] = rsum_mask
    return jnp.asarray(slab)


# --------------------------------- main ---------------------------------------

if __name__ == "__main__":
    # in_dim == hidden_dim is required by the residual adds in the PyTorch module
    HID = 32
    HEAD = 2
    NUM_GRAPHS, NODES_PER_GRAPH = 2, 6
    N = NUM_GRAPHS * NODES_PER_GRAPH

    key = jax.random.PRNGKey(0)
    kp, kh, ki = jax.random.split(key, 3)
    params = init_params(kp, HID, HEAD)

    # batched graph: two rings of 6 nodes, symmetric-normalized adjacency
    A = np.zeros((N, N), np.float32)
    for gi in range(NUM_GRAPHS):
        base = gi * NODES_PER_GRAPH
        for i in range(NODES_PER_GRAPH):
            j = base + (i + 1) % NODES_PER_GRAPH
            A[base + i, j] = 1.0
            A[j, base + i] = 1.0
    dinv = 1.0 / np.sqrt(A.sum(axis=1))
    Ahat = dinv[:, None] * A * dinv[None, :]

    member_np = np.zeros((NUM_GRAPHS, N), np.float32)
    for gi in range(NUM_GRAPHS):
        member_np[gi, gi * NODES_PER_GRAPH:(gi + 1) * NODES_PER_GRAPH] = 1.0
    member = jnp.asarray(member_np)

    graph_slab = pack_graph_slab(Ahat, member_np, HEAD)
    w_slab = pack_weight_slab(params, HID, HEAD)
    vec_slab = pack_vector_slab(params, HID)

    h = jax.random.normal(kh, (N, HID), jnp.float32)                 # node features
    inter_f = jax.random.normal(ki, (NUM_GRAPHS, HID), jnp.float32)  # per-graph inter feature

    readout, init_avg_h, att = gcn2_forward(
        graph_slab, w_slab, vec_slab, h, inter_f, head=HEAD)
    readout = jax.block_until_ready(readout)
    init_avg_h = jax.block_until_ready(init_avg_h)
    att = jax.block_until_ready(att)

    assert readout.shape == (NUM_GRAPHS, HID)
    assert init_avg_h.shape == (NUM_GRAPHS, HID)
    assert att.shape == (N, 1)
    assert bool(jnp.all(jnp.isfinite(readout)))
    assert bool(jnp.all(jnp.isfinite(init_avg_h)))
    assert bool(jnp.all(jnp.isfinite(att)))
    # softmax_nodes weights must sum to ~1 per graph (Newton-refined reciprocal)
    assert bool(jnp.all(jnp.abs(member @ att - 1.0) < 1e-4))
    print("KERNEL_OK")
</pallas_src>

<mosaic_0001>
module attributes {stable_mosaic.version = 11 : i64} {
  func.func @_gcn2_fused_kernel(%arg0: i32, %arg1: memref<16x768xf32, #tpu.memory_space<vmem>>, %arg2: memref<12x32xf32, #tpu.memory_space<vmem>>, %arg3: memref<2x32xf32, #tpu.memory_space<vmem>>, %arg4: memref<128x1152xf32, #tpu.memory_space<vmem>>, %arg5: memref<8x128xf32, #tpu.memory_space<vmem>>, %arg6: memref<16x128xf32, #tpu.memory_space<vmem>>) attributes {dimension_semantics = [#tpu.dimension_semantics<arbitrary>], iteration_bounds = array<i64: 1>, scalar_prefetch = 0 : i64, scratch_operands = 0 : i64, tpu.core_type = #tpu.core_type<tc>, window_params = [{pipeline_mode = #tpu.pipeline_mode<synchronous>, transform_indices = @transform_0, window_bounds = array<i64: 16, 768>}, {pipeline_mode = #tpu.pipeline_mode<synchronous>, transform_indices = @transform_1, window_bounds = array<i64: 12, 32>}, {pipeline_mode = #tpu.pipeline_mode<synchronous>, transform_indices = @transform_2, window_bounds = array<i64: 2, 32>}, {pipeline_mode = #tpu.pipeline_mode<synchronous>, transform_indices = @transform_3, window_bounds = array<i64: 128, 1152>}, {pipeline_mode = #tpu.pipeline_mode<synchronous>, transform_indices = @transform_4, window_bounds = array<i64: 8, 128>}, {pipeline_mode = #tpu.pipeline_mode<synchronous>, transform_indices = @transform_5, window_bounds = array<i64: 16, 128>}]} {
    %c0 = arith.constant 0 : index
    %c0_0 = arith.constant 0 : index
    %0 = vector.load %arg1[%c0, %c0_0] : memref<16x768xf32, #tpu.memory_space<vmem>>, vector<12x12xf32>
    %c0_1 = arith.constant 0 : index
    %c128 = arith.constant 128 : index
    %1 = vector.load %arg1[%c0_1, %c128] : memref<16x768xf32, #tpu.memory_space<vmem>>, vector<2x12xf32>
    %c8 = arith.constant 8 : index
    %c128_2 = arith.constant 128 : index
    %2 = vector.load %arg1[%c8, %c128_2] : memref<16x768xf32, #tpu.memory_space<vmem>>, vector<2x12xf32>
    %c0_3 = arith.constant 0 : index
    %c256 = arith.constant 256 : index
    %3 = vector.load %arg1[%c0_3, %c256] : memref<16x768xf32, #tpu.memory_space<vmem>>, vector<12x2xf32>
    %c0_4 = arith.constant 0 : index
    %c384 = arith.constant 384 : index
    %4 = vector.load %arg1[%c0_4, %c384] : memref<16x768xf32, #tpu.memory_space<vmem>>, vector<12x4xf32>
    %c0_5 = arith.constant 0 : index
    %c512 = arith.constant 512 : index
    %5 = vector.load %arg1[%c0_5, %c512] : memref<16x768xf32, #tpu.memory_space<vmem>>, vector<2x4xf32>
    %c0_6 = arith.constant 0 : index
    %c640 = arith.constant 640 : index
    %6 = vector.load %arg1[%c0_6, %c640] : memref<16x768xf32, #tpu.memory_space<vmem>>, vector<4x2xf32>
    %c0_7 = arith.constant 0 : index
    %c0_8 = arith.constant 0 : index
    %7 = vector.load %arg4[%c0_7, %c0_8] : memref<128x1152xf32, #tpu.memory_space<vmem>>, vector<32x128xf32>
    %c0_9 = arith.constant 0 : index
    %c128_10 = arith.constant 128 : index
    %8 = vector.load %arg4[%c0_9, %c128_10] : memref<128x1152xf32, #tpu.memory_space<vmem>>, vector<32x128xf32>
    %c0_11 = arith.constant 0 : index
    %c256_12 = arith.constant 256 : index
    %9 = vector.load %arg4[%c0_11, %c256_12] : memref<128x1152xf32, #tpu.memory_space<vmem>>, vector<128x32xf32>
    %c0_13 = arith.constant 0 : index
    %c384_14 = arith.constant 384 : index
    %10 = vector.load %arg4[%c0_13, %c384_14] : memref<128x1152xf32, #tpu.memory_space<vmem>>, vector<32x64xf32>
    %c0_15 = arith.constant 0 : index
    %c512_16 = arith.constant 512 : index
    %11 = vector.load %arg4[%c0_15, %c512_16] : memref<128x1152xf32, #tpu.memory_space<vmem>>, vector<64x32xf32>
    %c0_17 = arith.constant 0 : index
    %c640_18 = arith.constant 640 : index
    %12 = vector.load %arg4[%c0_17, %c640_18] : memref<128x1152xf32, #tpu.memory_space<vmem>>, vector<32x32xf32>
    %c0_19 = arith.constant 0 : index
    %c768 = arith.constant 768 : index
    %13 = vector.load %arg4[%c0_19, %c768] : memref<128x1152xf32, #tpu.memory_space<vmem>>, vector<32x32xf32>
    %c0_20 = arith.constant 0 : index
    %c896 = arith.constant 896 : index
    %14 = vector.load %arg4[%c0_20, %c896] : memref<128x1152xf32, #tpu.memory_space<vmem>>, vector<128x2xf32>
    %c0_21 = arith.constant 0 : index
    %c1024 = arith.constant 1024 : index
    %15 = vector.load %arg4[%c0_21, %c1024] : memref<128x1152xf32, #tpu.memory_space<vmem>>, vector<2x128xf32>
    %c0_22 = arith.constant 0 : index
    %c0_23 = arith.constant 0 : index
    %16 = vector.load %arg5[%c0_22, %c0_23] : memref<8x128xf32, #tpu.memory_space<vmem>>, vector<8x128xf32>
    %17 = vector.extract_strided_slice %16 {offsets = [0, 0], sizes = [1, 32], strides = [1, 1]} : vector<8x128xf32> to vector<1x32xf32>
    %18 = vector.extract_strided_slice %16 {offsets = [1, 0], sizes = [1, 32], strides = [1, 1]} : vector<8x128xf32> to vector<1x32xf32>
    %19 = vector.extract_strided_slice %16 {offsets = [2, 0], sizes = [1, 64], strides = [1, 1]} : vector<8x128xf32> to vector<1x64xf32>
    %20 = vector.extract_strided_slice %16 {offsets = [3, 0], sizes = [1, 32], strides = [1, 1]} : vector<8x128xf32> to vector<1x32xf32>
    %21 = vector.extract_strided_slice %16 {offsets = [4, 0], sizes = [1, 32], strides = [1, 1]} : vector<8x128xf32> to vector<1x32xf32>
    %22 = vector.extract_strided_slice %16 {offsets = [5, 0], sizes = [1, 32], strides = [1, 1]} : vector<8x128xf32> to vector<1x32xf32>
    %c0_24 = arith.constant 0 : index
    %c0_25 = arith.constant 0 : index
    %23 = vector.load %arg2[%c0_24, %c0_25] : memref<12x32xf32, #tpu.memory_space<vmem>>, vector<12x32xf32>
    %cst = arith.constant dense<0.000000e+00> : vector<2x32xf32>
    %24 = tpu.matmul %2, %23, %cst {dimension_numbers = #tpu.dot_dimension_numbers<[1], [0], [0], [1], [0, 0, 1, 1], [], []>} : vector<2x12xf32>, vector<12x32xf32>, vector<2x32xf32> -> vector<2x32xf32>
    %cst_26 = arith.constant dense<0.000000e+00> : vector<12x32xf32>
    %25 = tpu.matmul %0, %23, %cst_26 {dimension_numbers = #tpu.dot_dimension_numbers<[1], [0], [0], [1], [0, 0, 1, 1], [], []>} : vector<12x12xf32>, vector<12x32xf32>, vector<12x32xf32> -> vector<12x32xf32>
    %cst_27 = arith.constant dense<0.000000e+00> : vector<12x32xf32>
    %26 = tpu.matmul %25, %12, %cst_27 {dimension_numbers = #tpu.dot_dimension_numbers<[1], [0], [0], [1], [0, 0, 1, 1], [], []>} : vector<12x32xf32>, vector<32x32xf32>, vector<12x32xf32> -> vector<12x32xf32>
    %27 = vector.broadcast %17 : vector<1x32xf32> to vector<12x32xf32>
    %28 = arith.addf %26, %27 : vector<12x32xf32>
    %cst_28 = arith.constant 0.000000e+00 : f32
    %29 = vector.broadcast %cst_28 : f32 to vector<12x32xf32>
    %30 = arith.maximumf %28, %29 : vector<12x32xf32>
    %31 = arith.addf %23, %30 : vector<12x32xf32>
    %cst_29 = arith.constant dense<0.000000e+00> : vector<12x32xf32>
    %32 = tpu.matmul %0, %31, %cst_29 {dimension_numbers = #tpu.dot_dimension_numbers<[1], [0], [0], [1], [0, 0, 1, 1], [], []>} : vector<12x12xf32>, vector<12x32xf32>, vector<12x32xf32> -> vector<12x32xf32>
    %cst_30 = arith.constant dense<0.000000e+00> : vector<12x32xf32>
    %33 = tpu.matmul %32, %13, %cst_30 {dimension_numbers = #tpu.dot_dimension_numbers<[1], [0], [0], [1], [0, 0, 1, 1], [], []>} : vector<12x32xf32>, vector<32x32xf32>, vector<12x32xf32> -> vector<12x32xf32>
    %34 = vector.broadcast %18 : vector<1x32xf32> to vector<12x32xf32>
    %35 = arith.addf %33, %34 : vector<12x32xf32>
    %cst_31 = arith.constant 0.000000e+00 : f32
    %36 = vector.broadcast %cst_31 : f32 to vector<12x32xf32>
    %37 = arith.maximumf %35, %36 : vector<12x32xf32>
    %38 = arith.addf %31, %37 : vector<12x32xf32>
    %c0_32 = arith.constant 0 : index
    %c0_33 = arith.constant 0 : index
    %39 = vector.load %arg3[%c0_32, %c0_33] : memref<2x32xf32, #tpu.memory_space<vmem>>, vector<2x32xf32>
    %cst_34 = arith.constant dense<0.000000e+00> : vector<12x32xf32>
    %40 = tpu.matmul %3, %39, %cst_34 {dimension_numbers = #tpu.dot_dimension_numbers<[1], [0], [0], [1], [0, 0, 1, 1], [], []>} : vector<12x2xf32>, vector<2x32xf32>, vector<12x32xf32> -> vector<12x32xf32>
    %cst_35 = arith.constant dense<0.000000e+00> : vector<12x128xf32>
    %41 = tpu.matmul %38, %7, %cst_35 {dimension_numbers = #tpu.dot_dimension_numbers<[1], [0], [0], [1], [0, 0, 1, 1], [], []>} : vector<12x32xf32>, vector<32x128xf32>, vector<12x128xf32> -> vector<12x128xf32>
    %cst_36 = arith.constant dense<0.000000e+00> : vector<12x128xf32>
    %42 = tpu.matmul %40, %8, %cst_36 {dimension_numbers = #tpu.dot_dimension_numbers<[1], [0], [0], [1], [0, 0, 1, 1], [], []>} : vector<12x32xf32>, vector<32x128xf32>, vector<12x128xf32> -> vector<12x128xf32>
    %43 = arith.mulf %41, %42 : vector<12x128xf32>
    %cst_37 = arith.constant dense<0.000000e+00> : vector<12x2xf32>
    %44 = tpu.matmul %43, %14, %cst_37 {dimension_numbers = #tpu.dot_dimension_numbers<[1], [0], [0], [1], [0, 0, 1, 1], [], []>} : vector<12x128xf32>, vector<128x2xf32>, vector<12x2xf32> -> vector<12x2xf32>
    %cst_38 = arith.constant dense<0.000000e+00> : vector<12x4xf32>
    %45 = tpu.matmul %44, %5, %cst_38 {dimension_numbers = #tpu.dot_dimension_numbers<[1], [0], [0], [1], [0, 0, 1, 1], [], []>} : vector<12x2xf32>, vector<2x4xf32>, vector<12x4xf32> -> vector<12x4xf32>
    %cst_39 = arith.constant 0.000000e+00 : f32
    %46 = vector.broadcast %cst_39 : f32 to vector<12x4xf32>
    %47 = arith.cmpf ogt, %4, %46 : vector<12x4xf32>
    %cst_40 = arith.constant -1.000000e+30 : f32
    %48 = vector.broadcast %cst_40 : f32 to vector<12x4xf32>
    %49 = arith.select %47, %45, %48 : vector<12x4xi1>, vector<12x4xf32>
    %cst_41 = arith.constant dense<0xFF800000> : vector<4xf32>
    %50 = vector.multi_reduction <maximumf>, %49, %cst_41 [0] : vector<12x4xf32> to vector<4xf32>
    %51 = vector.shape_cast %50 : vector<4xf32> to vector<1x4xf32>
    %52 = vector.broadcast %51 : vector<1x4xf32> to vector<12x4xf32>
    %53 = arith.mulf %4, %52 : vector<12x4xf32>
    %cst_42 = arith.constant dense<0.000000e+00> : vector<12x2xf32>
    %54 = tpu.matmul %53, %6, %cst_42 {dimension_numbers = #tpu.dot_dimension_numbers<[1], [0], [0], [1], [0, 0, 1, 1], [], []>} : vector<12x4xf32>, vector<4x2xf32>, vector<12x2xf32> -> vector<12x2xf32>
    %55 = arith.subf %44, %54 : vector<12x2xf32>
    %56 = math.exp %55 : vector<12x2xf32>
    %cst_43 = arith.constant dense<0.000000e+00> : vector<2x2xf32>
    %57 = tpu.matmul %1, %56, %cst_43 {dimension_numbers = #tpu.dot_dimension_numbers<[1], [0], [0], [1], [0, 0, 1, 1], [], []>} : vector<2x12xf32>, vector<12x2xf32>, vector<2x2xf32> -> vector<2x2xf32>
    %cst_44 = arith.constant dense<0.000000e+00> : vector<12x2xf32>
    %58 = tpu.matmul %3, %57, %cst_44 {dimension_numbers = #tpu.dot_dimension_numbers<[1], [0], [0], [1], [0, 0, 1, 1], [], []>} : vector<12x2xf32>, vector<2x2xf32>, vector<12x2xf32> -> vector<12x2xf32>
    %59 = tpu.reciprocal %58 {approx = true} : vector<12x2xf32> -> vector<12x2xf32>
    %60 = arith.mulf %58, %59 : vector<12x2xf32>
    %cst_45 = arith.constant 2.000000e+00 : f32
    %61 = vector.broadcast %cst_45 : f32 to vector<12x2xf32>
    %62 = arith.subf %61, %60 : vector<12x2xf32>
    %63 = arith.mulf %59, %62 : vector<12x2xf32>
    %64 = arith.mulf %56, %63 : vector<12x2xf32>
    %cst_46 = arith.constant dense<0.000000e+00> : vector<12x128xf32>
    %65 = tpu.matmul %64, %15, %cst_46 {dimension_numbers = #tpu.dot_dimension_numbers<[1], [0], [0], [1], [0, 0, 1, 1], [], []>} : vector<12x2xf32>, vector<2x128xf32>, vector<12x128xf32> -> vector<12x128xf32>
    %66 = arith.mulf %41, %65 : vector<12x128xf32>
    %cst_47 = arith.constant dense<0.000000e+00> : vector<12x32xf32>
    %67 = tpu.matmul %66, %9, %cst_47 {dimension_numbers = #tpu.dot_dimension_numbers<[1], [0], [0], [1], [0, 0, 1, 1], [], []>} : vector<12x128xf32>, vector<128x32xf32>, vector<12x32xf32> -> vector<12x32xf32>
    %68 = arith.addf %67, %38 : vector<12x32xf32>
    %cst_48 = arith.constant dense<0.000000e+00> : vector<12xf32>
    %69 = vector.multi_reduction <add>, %68, %cst_48 [1] : vector<12x32xf32> to vector<12xf32>
    %70 = vector.shape_cast %69 : vector<12xf32> to vector<12x1xf32>
    %cst_49 = arith.constant 3.200000e+01 : f32
    %71 = vector.broadcast %cst_49 : f32 to vector<12x1xf32>
    %72 = arith.divf %70, %71 : vector<12x1xf32>
    %73 = vector.broadcast %72 : vector<12x1xf32> to vector<12x32xf32>
    %74 = arith.subf %68, %73 : vector<12x32xf32>
    %75 = arith.mulf %74, %74 : vector<12x32xf32>
    %cst_50 = arith.constant dense<0.000000e+00> : vector<12xf32>
    %76 = vector.multi_reduction <add>, %75, %cst_50 [1] : vector<12x32xf32> to vector<12xf32>
    %77 = vector.shape_cast %76 : vector<12xf32> to vector<12x1xf32>
    %cst_51 = arith.constant 3.200000e+01 : f32
    %78 = vector.broadcast %cst_51 : f32 to vector<12x1xf32>
    %79 = arith.divf %77, %78 : vector<12x1xf32>
    %80 = vector.broadcast %72 : vector<12x1xf32> to vector<12x32xf32>
    %81 = arith.subf %68, %80 : vector<12x32xf32>
    %cst_52 = arith.constant 9.99999974E-6 : f32
    %82 = vector.broadcast %cst_52 : f32 to vector<12x1xf32>
    %83 = arith.addf %79, %82 : vector<12x1xf32>
    %84 = math.rsqrt %83 : vector<12x1xf32>
    %85 = vector.broadcast %84 : vector<12x1xf32> to vector<12x32xf32>
    %86 = arith.mulf %81, %85 : vector<12x32xf32>
    %87 = vector.broadcast %21 : vector<1x32xf32> to vector<12x32xf32>
    %88 = arith.mulf %86, %87 : vector<12x32xf32>
    %89 = vector.broadcast %22 : vector<1x32xf32> to vector<12x32xf32>
    %90 = arith.addf %88, %89 : vector<12x32xf32>
    %cst_53 = arith.constant dense<0.000000e+00> : vector<12x64xf32>
    %91 = tpu.matmul %90, %10, %cst_53 {dimension_numbers = #tpu.dot_dimension_numbers<[1], [0], [0], [1], [0, 0, 1, 1], [], []>} : vector<12x32xf32>, vector<32x64xf32>, vector<12x64xf32> -> vector<12x64xf32>
    %92 = vector.broadcast %19 : vector<1x64xf32> to vector<12x64xf32>
    %93 = arith.addf %91, %92 : vector<12x64xf32>
    %cst_54 = arith.constant 0.000000e+00 : f32
    %94 = vector.broadcast %cst_54 : f32 to vector<12x64xf32>
    %95 = arith.maximumf %93, %94 : vector<12x64xf32>
    %cst_55 = arith.constant dense<0.000000e+00> : vector<12x32xf32>
    %96 = tpu.matmul %95, %11, %cst_55 {dimension_numbers = #tpu.dot_dimension_numbers<[1], [0], [0], [1], [0, 0, 1, 1], [], []>} : vector<12x64xf32>, vector<64x32xf32>, vector<12x32xf32> -> vector<12x32xf32>
    %97 = vector.broadcast %20 : vector<1x32xf32> to vector<12x32xf32>
    %98 = arith.addf %96, %97 : vector<12x32xf32>
    %99 = arith.addf %98, %90 : vector<12x32xf32>
    %cst_56 = arith.constant dense<0.000000e+00> : vector<12xf32>
    %100 = vector.multi_reduction <add>, %99, %cst_56 [1] : vector<12x32xf32> to vector<12xf32>
    %101 = vector.shape_cast %100 : vector<12xf32> to vector<12x1xf32>
    %cst_57 = arith.constant 3.200000e+01 : f32
    %102 = vector.broadcast %cst_57 : f32 to vector<12x1xf32>
    %103 = arith.divf %101, %102 : vector<12x1xf32>
    %104 = vector.broadcast %103 : vector<12x1xf32> to vector<12x32xf32>
    %105 = arith.subf %99, %104 : vector<12x32xf32>
    %106 = arith.mulf %105, %105 : vector<12x32xf32>
    %cst_58 = arith.constant dense<0.000000e+00> : vector<12xf32>
    %107 = vector.multi_reduction <add>, %106, %cst_58 [1] : vector<12x32xf32> to vector<12xf32>
    %108 = vector.shape_cast %107 : vector<12xf32> to vector<12x1xf32>
    %cst_59 = arith.constant 3.200000e+01 : f32
    %109 = vector.broadcast %cst_59 : f32 to vector<12x1xf32>
    %110 = arith.divf %108, %109 : vector<12x1xf32>
    %111 = vector.broadcast %103 : vector<12x1xf32> to vector<12x32xf32>
    %112 = arith.subf %99, %111 : vector<12x32xf32>
    %cst_60 = arith.constant 9.99999974E-6 : f32
    %113 = vector.broadcast %cst_60 : f32 to vector<12x1xf32>
    %114 = arith.addf %110, %113 : vector<12x1xf32>
    %115 = math.rsqrt %114 : vector<12x1xf32>
    %116 = vector.broadcast %115 : vector<12x1xf32> to vector<12x32xf32>
    %117 = arith.mulf %112, %116 : vector<12x32xf32>
    %118 = vector.broadcast %21 : vector<1x32xf32> to vector<12x32xf32>
    %119 = arith.mulf %117, %118 : vector<12x32xf32>
    %120 = vector.broadcast %22 : vector<1x32xf32> to vector<12x32xf32>
    %121 = arith.addf %119, %120 : vector<12x32xf32>
    %cst_61 = arith.constant 0.000000e+00 : f32
    %122 = vector.broadcast %cst_61 : f32 to vector<16x128xf32>
    %c0_62 = arith.constant 0 : index
    %c0_63 = arith.constant 0 : index
    %123 = vector.load %arg6[%c0_62, %c0_63] : memref<16x128xf32, #tpu.memory_space<vmem>>, vector<16x128xf32>
    tpu.vector_store %arg6[%c0_62, %c0_63], %122 {strides = array<i32>} : memref<16x128xf32, #tpu.memory_space<vmem>>, vector<16x128xf32>,
    %cst_64 = arith.constant dense<0.000000e+00> : vector<2x32xf32>
    %124 = tpu.matmul %1, %121, %cst_64 {dimension_numbers = #tpu.dot_dimension_numbers<[1], [0], [0], [1], [0, 0, 1, 1], [], []>} : vector<2x12xf32>, vector<12x32xf32>, vector<2x32xf32> -> vector<2x32xf32>
    %c0_65 = arith.constant 0 : index
    %c0_66 = arith.constant 0 : index
    %125 = vector.load %arg6[%c0_65, %c0_66] : memref<16x128xf32, #tpu.memory_space<vmem>>, vector<2x32xf32>
    tpu.vector_store %arg6[%c0_65, %c0_66], %124 {strides = array<i32>} : memref<16x128xf32, #tpu.memory_space<vmem>>, vector<2x32xf32>,
    %c2 = arith.constant 2 : index
    %c0_67 = arith.constant 0 : index
    %126 = vector.load %arg6[%c2, %c0_67] : memref<16x128xf32, #tpu.memory_space<vmem>>, vector<2x32xf32>
    tpu.vector_store %arg6[%c2, %c0_67], %24 {strides = array<i32>} : memref<16x128xf32, #tpu.memory_space<vmem>>, vector<2x32xf32>,
    %127 = vector.extract_strided_slice %64 {offsets = [0, 1], sizes = [12, 1], strides = [1, 1]} : vector<12x2xf32> to vector<12x1xf32>
    %c4 = arith.constant 4 : index
    %c0_68 = arith.constant 0 : index
    %128 = vector.load %arg6[%c4, %c0_68] : memref<16x128xf32, #tpu.memory_space<vmem>>, vector<12x1xf32>
    tpu.vector_store %arg6[%c4, %c0_68], %127 {strides = array<i32>} : memref<16x128xf32, #tpu.memory_space<vmem>>, vector<12x1xf32>,
    return
  }
  func.func @transform_0(%arg0: i32) -> (i32, i32) {
    %c0_i32 = arith.constant 0 : i32
    %c0_i32_0 = arith.constant 0 : i32
    %c0_i32_1 = arith.constant 0 : i32
    return %c0_i32, %c0_i32_0 : i32, i32
  }
  func.func @transform_1(%arg0: i32) -> (i32, i32) {
    %c0_i32 = arith.constant 0 : i32
    %c0_i32_0 = arith.constant 0 : i32
    %c0_i32_1 = arith.constant 0 : i32
    return %c0_i32, %c0_i32_0 : i32, i32
  }
  func.func @transform_2(%arg0: i32) -> (i32, i32) {
    %c0_i32 = arith.constant 0 : i32
    %c0_i32_0 = arith.constant 0 : i32
    %c0_i32_1 = arith.constant 0 : i32
    return %c0_i32, %c0_i32_0 : i32, i32
  }
  func.func @transform_3(%arg0: i32) -> (i32, i32) {
    %c0_i32 = arith.constant 0 : i32
    %c0_i32_0 = arith.constant 0 : i32
    %c0_i32_1 = arith.constant 0 : i32
    return %c0_i32, %c0_i32_0 : i32, i32
  }
  func.func @transform_4(%arg0: i32) -> (i32, i32) {
    %c0_i32 = arith.constant 0 : i32
    %c0_i32_0 = arith.constant 0 : i32
    %c0_i32_1 = arith.constant 0 : i32
    return %c0_i32, %c0_i32_0 : i32, i32
  }
  func.func @transform_5(%arg0: i32) -> (i32, i32) {
    %c0_i32 = arith.constant 0 : i32
    %c0_i32_0 = arith.constant 0 : i32
    %c0_i32_1 = arith.constant 0 : i32
    return %c0_i32, %c0_i32_0 : i32, i32
  }
}

</mosaic_0001>

<llo_original>
// kernel: tpu_custom_call.1
$region0: #{tpu_custom_call.1}
  #allocation0 [shape = 'u32[]', space=smem, size = 0x4, offset = 0x4, fixed_abs, tag = 'smem constant byte address 0x4 - core index']
  #allocation1 [shape = 'u32[72,128]{1,0:T(1,128)}', space=vmem, size = 0x9000, scoped, tag = 'internal scratch']
  %s0 = inlined_call_operand.hbm [shape: f32[16,768], index: 0, kind: input, shape index: {}]
  %s1 = inlined_call_operand.hbm [shape: f32[12,32], index: 1, kind: input, shape index: {}]
  %s2 = inlined_call_operand.hbm [shape: f32[2,32], index: 2, kind: input, shape index: {}]
  %s3 = inlined_call_operand.hbm [shape: f32[128,1152], index: 3, kind: input, shape index: {}]
  %s4 = inlined_call_operand.hbm [shape: f32[8,128], index: 4, kind: input, shape index: {}]
  %s5 = inlined_call_operand.hbm [shape: f32[16,128], index: 5, kind: output, shape index: {}]
  %s6 = sld [smem:[#allocation0]]
  $region50: #{tpu_custom_call.1} parent=0
    _
  %s8 = ssub.s32 1, %s6
  %s9 = scalar_select 0, %s8, %s6
  $region1: #{tpu_custom_call.1} parent=0
    #allocation2 [shape = 'u8[49152]{0}', space=vmem, size = 0xc000, scoped, tag = 'input window, operand 0, single buffered']
    #allocation3 [shape = 's32[1]{0}', space=sflag, size = 0x4, scoped, tag = 'scoped memory for tpu_custom_call.1']
    #allocation4 [shape = 's32[1]{0}', space=sflag, size = 0x4, scoped, tag = 'scoped memory for tpu_custom_call.1']
    #allocation5 [shape = 'u8[8192]{0}', space=vmem, size = 0x2000, scoped, tag = 'input window, operand 1, single buffered']
    #allocation6 [shape = 's32[1]{0}', space=sflag, size = 0x4, scoped, tag = 'scoped memory for tpu_custom_call.1']
    #allocation7 [shape = 'u8[1024]{0}', space=vmem, size = 0x400, scoped, tag = 'input window, operand 2, single buffered']
    #allocation8 [shape = 'u8[589824]{0}', space=vmem, size = 0x90000, scoped, tag = 'input window, operand 3, single buffered']
    #allocation9 [shape = 's32[1]{0}', space=sflag, size = 0x4, scoped, tag = 'scoped memory for tpu_custom_call.1']
    #allocation10 [shape = 'u8[4096]{0}', space=vmem, size = 0x1000, scoped, tag = 'input window, operand 4, single buffered']
    #allocation11 [shape = 'u8[8192]{0}', space=vmem, size = 0x2000, scoped, tag = 'output window, operand 0, single buffered']
    %10 = vsyncpa [#allocation3], 0
    %11 = vsyncpa [#allocation6], 0
    %12 = vsyncpa [#allocation9], 0
    %13 = vsyncpa [#allocation4], 0
    // Predicated region
    $region2: #{tpu_custom_call.1} parent=1 // pred_check
      _
    $region3: #{tpu_custom_call.1} parent=1 // pred_check_branch
      %15 = sbr.rel (0) target = $region5
    $region4: #{tpu_custom_call.1} parent=1 // pred_region
      %17 = vsyncadd [#allocation3], 0
      %s18 = sshll.u32 %s0, 4
      %s19 = int_to_ptr.hbm [resolvable:$true] %s18
      %s20 = sshll.u32 [#allocation2], 4
      %s21 = int_to_ptr.vmem [resolvable:$true] %s20
      %26 = dma.hbm_to_vmem [thread:$0]  %s19, 1536, %s21, [#allocation3], 768, 768, 48
    $region5: #{tpu_custom_call.1} parent=1 // pred_fallthru
      _
    // Predicated region
    $region6: #{tpu_custom_call.1} parent=1 // pred_check
      _
    $region7: #{tpu_custom_call.1} parent=1 // pred_check_branch
      %28 = sbr.rel (0) target = $region9
    $region8: #{tpu_custom_call.1} parent=1 // pred_region
      %30 = vsyncadd [#allocation6], 0
      %s31 = sshll.u32 %s1, 4
      %s32 = int_to_ptr.hbm [resolvable:$true] %s31
      %s33 = sshll.u32 [#allocation5], 4
      %s34 = int_to_ptr.vmem [resolvable:$true] %s33
      %39 = dma.hbm_to_vmem [thread:$0]  %s32, 256, %s34, [#allocation6], 128, 128, 8
    $region9: #{tpu_custom_call.1} parent=1 // pred_fallthru
      _
    // Predicated region
    $region10: #{tpu_custom_call.1} parent=1 // pred_check
      _
    $region11: #{tpu_custom_call.1} parent=1 // pred_check_branch
      %41 = sbr.rel (0) target = $region13
    $region12: #{tpu_custom_call.1} parent=1 // pred_region
      %43 = vsyncadd [#allocation6], 0
      %s45 = sshll.u32 %s2, 4
      %s46 = int_to_ptr.hbm [resolvable:$true] %s45
      %s47 = sshll.u32 [#allocation7], 4
      %s48 = int_to_ptr.vmem [resolvable:$true] %s47
      %50 = dma.hbm_to_vmem [thread:$0]  %s46, 32, %s48, [#allocation6]
    $region13: #{tpu_custom_call.1} parent=1 // pred_fallthru
      _
    // Predicated region
    $region14: #{tpu_custom_call.1} parent=1 // pred_check
      _
    $region15: #{tpu_custom_call.1} parent=1 // pred_check_branch
      %52 = sbr.rel (0) target = $region17
    $region16: #{tpu_custom_call.1} parent=1 // pred_region
      %54 = vsyncadd [#allocation9], 0
      %s55 = sshll.u32 %s3, 4
      %s56 = int_to_ptr.hbm [resolvable:$true] %s55
      %s57 = sshll.u32 [#allocation8], 4
      %s58 = int_to_ptr.vmem [resolvable:$true] %s57
      %63 = dma.hbm_to_vmem [thread:$0]  %s56, 18432, %s58, [#allocation9], 1152, 1152, 72
    $region17: #{tpu_custom_call.1} parent=1 // pred_fallthru
      _
    // Predicated region
    $region18: #{tpu_custom_call.1} parent=1 // pred_check
      _
    $region19: #{tpu_custom_call.1} parent=1 // pred_check_branch
      %65 = sbr.rel (0) target = $region21
    $region20: #{tpu_custom_call.1} parent=1 // pred_region
      %67 = vsyncadd [#allocation9], 0
      %s69 = sshll.u32 %s4, 4
      %s70 = int_to_ptr.hbm [resolvable:$true] %s69
      %s71 = sshll.u32 [#allocation10], 4
      %s72 = int_to_ptr.vmem [resolvable:$true] %s71
      %74 = dma.hbm_to_vmem [thread:$0]  %s70, 128, %s72, [#allocation9]
    $region21: #{tpu_custom_call.1} parent=1 // pred_fallthru
      _
    // Predicated region
    $region22: #{tpu_custom_call.1} parent=1 // pred_check
      _
    $region23: #{tpu_custom_call.1} parent=1 // pred_check_branch
      %76 = sbr.rel (0) target = $region25
    $region24: #{tpu_custom_call.1} parent=1 // pred_region
      %78 = dma.done [#allocation3], 1536
    $region25: #{tpu_custom_call.1} parent=1 // pred_fallthru
      _
    // Predicated region
    $region26: #{tpu_custom_call.1} parent=1 // pred_check
      _
    $region27: #{tpu_custom_call.1} parent=1 // pred_check_branch
      %80 = sbr.rel (0) target = $region29
    $region28: #{tpu_custom_call.1} parent=1 // pred_region
      %82 = dma.done [#allocation6], 256
    $region29: #{tpu_custom_call.1} parent=1 // pred_fallthru
      _
    // Predicated region
    $region30: #{tpu_custom_call.1} parent=1 // pred_check
      _
    $region31: #{tpu_custom_call.1} parent=1 // pred_check_branch
      %84 = sbr.rel (0) target = $region33
    $region32: #{tpu_custom_call.1} parent=1 // pred_region
      %86 = dma.done [#allocation6], 32
    $region33: #{tpu_custom_call.1} parent=1 // pred_fallthru
      _
    // Predicated region
    $region34: #{tpu_custom_call.1} parent=1 // pred_check
      _
    $region35: #{tpu_custom_call.1} parent=1 // pred_check_branch
      %88 = sbr.rel (0) target = $region37
    $region36: #{tpu_custom_call.1} parent=1 // pred_region
      %90 = dma.done [#allocation9], 18432
    $region37: #{tpu_custom_call.1} parent=1 // pred_fallthru
      _
    // Predicated region
    $region38: #{tpu_custom_call.1} parent=1 // pred_check
      _
    $region39: #{tpu_custom_call.1} parent=1 // pred_check_branch
      %92 = sbr.rel (0) target = $region41
    $region40: #{tpu_custom_call.1} parent=1 // pred_region
      %94 = dma.done [#allocation9], 128
    $region41: #{tpu_custom_call.1} parent=1 // pred_fallthru
      _
    %v95 = vld [vmem:[#allocation2] sm:$0xff]
    %v96 = vld [vmem:[#allocation2 + $0x30] sm:$0xf]
    %v97 = vld [vmem:[#allocation2 + $0x8] sm:$0x3]
    %v98 = vld [vmem:[#allocation2 + $0x38] sm:$0x3]
    %v99 = vld [vmem:[#allocation2 + $0x10] sm:$0xff]
    %v100 = vld [vmem:[#allocation2 + $0x40] sm:$0xf]
    %v101 = vld [vmem:[#allocation2 + $0x18] sm:$0xff]
    %v102 = vld [vmem:[#allocation2 + $0x48] sm:$0xf]
    %v103 = vld [vmem:[#allocation2 + $0x20] sm:$0x3]
    %v104 = vld [vmem:[#allocation2 + $0x28] sm:$0xf]
    %v105 = vld [vmem:[#allocation8] sm:$0xff]
    %v106 = vld [vmem:[#allocation8 + $0x48] sm:$0xff]
    %v107 = vld [vmem:[#allocation8 + $0x90] sm:$0xff]
    %v108 = vld [vmem:[#allocation8 + $0xd8] sm:$0xff]
    %v109 = vld [vmem:[#allocation8 + $0x8] sm:$0xff]
    %v110 = vld [vmem:[#allocation8 + $0x50] sm:$0xff]
    %v111 = vld [vmem:[#allocation8 + $0x98] sm:$0xff]
    %v112 = vld [vmem:[#allocation8 + $0xe0] sm:$0xff]
    %v113 = vld [vmem:[#allocation8 + $0x10] sm:$0xff]
    %v114 = vld [vmem:[#allocation8 + $0x58] sm:$0xff]
    %v115 = vld [vmem:[#allocation8 + $0xa0] sm:$0xff]
    %v116 = vld [vmem:[#allocation8 + $0xe8] sm:$0xff]
    %v117 = vld [vmem:[#allocation8 + $0x130] sm:$0xff]
    %v118 = vld [vmem:[#allocation8 + $0x178] sm:$0xff]
    %v119 = vld [vmem:[#allocation8 + $0x1c0] sm:$0xff]
    %v120 = vld [vmem:[#allocation8 + $0x208] sm:$0xff]
    %v121 = vld [vmem:[#allocation8 + $0x250] sm:$0xff]
    %v122 = vld [vmem:[#allocation8 + $0x298] sm:$0xff]
    %v123 = vld [vmem:[#allocation8 + $0x2e0] sm:$0xff]
    %v124 = vld [vmem:[#allocation8 + $0x328] sm:$0xff]
    %v125 = vld [vmem:[#allocation8 + $0x370] sm:$0xff]
    %v126 = vld [vmem:[#allocation8 + $0x3b8] sm:$0xff]
    %v127 = vld [vmem:[#allocation8 + $0x400] sm:$0xff]
    %v128 = vld [vmem:[#allocation8 + $0x448] sm:$0xff]
    %v129 = vld [vmem:[#allocation8 + $0x18] sm:$0xff]
    %v130 = vld [vmem:[#allocation8 + $0x60] sm:$0xff]
    %v131 = vld [vmem:[#allocation8 + $0xa8] sm:$0xff]
    %v132 = vld [vmem:[#allocation8 + $0xf0] sm:$0xff]
    %v133 = vld [vmem:[#allocation8 + $0x20] sm:$0xff]
    %v134 = vld [vmem:[#allocation8 + $0x68] sm:$0xff]
    %v135 = vld [vmem:[#allocation8 + $0xb0] sm:$0xff]
    %v136 = vld [vmem:[#allocation8 + $0xf8] sm:$0xff]
    %v137 = vld [vmem:[#allocation8 + $0x140] sm:$0xff]
    %v138 = vld [vmem:[#allocation8 + $0x188] sm:$0xff]
    %v139 = vld [vmem:[#allocation8 + $0x1d0] sm:$0xff]
    %v140 = vld [vmem:[#allocation8 + $0x218] sm:$0xff]
    %v141 = vld [vmem:[#allocation8 + $0x28] sm:$0xff]
    %v142 = vld [vmem:[#allocation8 + $0x70] sm:$0xff]
    %v143 = vld [vmem:[#allocation8 + $0xb8] sm:$0xff]
    %v144 = vld [vmem:[#allocation8 + $0x100] sm:$0xff]
    %v145 = vld [vmem:[#allocation8 + $0x30] sm:$0xff]
    %v146 = vld [vmem:[#allocation8 + $0x78] sm:$0xff]
    %v147 = vld [vmem:[#allocation8 + $0xc0] sm:$0xff]
    %v148 = vld [vmem:[#allocation8 + $0x108] sm:$0xff]
    %v149 = vld [vmem:[#allocation8 + $0x38] sm:$0xff]
    %v150 = vld [vmem:[#allocation8 + $0x80] sm:$0xff]
    %v151 = vld [vmem:[#allocation8 + $0xc8] sm:$0xff]
    %v152 = vld [vmem:[#allocation8 + $0x110] sm:$0xff]
    %v153 = vld [vmem:[#allocation8 + $0x158] sm:$0xff]
    %v154 = vld [vmem:[#allocation8 + $0x1a0] sm:$0xff]
    %v155 = vld [vmem:[#allocation8 + $0x1e8] sm:$0xff]
    %v156 = vld [vmem:[#allocation8 + $0x230] sm:$0xff]
    %v157 = vld [vmem:[#allocation8 + $0x278] sm:$0xff]
    %v158 = vld [vmem:[#allocation8 + $0x2c0] sm:$0xff]
    %v159 = vld [vmem:[#allocation8 + $0x308] sm:$0xff]
    %v160 = vld [vmem:[#allocation8 + $0x350] sm:$0xff]
    %v161 = vld [vmem:[#allocation8 + $0x398] sm:$0xff]
    %v162 = vld [vmem:[#allocation8 + $0x3e0] sm:$0xff]
    %v163 = vld [vmem:[#allocation8 + $0x428] sm:$0xff]
    %v164 = vld [vmem:[#allocation8 + $0x470] sm:$0xff]
    %v165 = vld [vmem:[#allocation8 + $0x40] sm:$0x3]
    %v166 = vld [vmem:[#allocation10] sm:$0xff]
    %v167 = vld [vmem:[#allocation5] sm:$0xff]
    %v168 = vld [vmem:[#allocation5 + $0x8] sm:$0xf]
    %vm169 = vcmask 97280
    %v171 = vsel %vm169, %v98, 0
    %vm173 = vcmask 1043456
    %v175 = vsel %vm173, %v168, 0
    %177 = vmatpush.msra.mxu0 0.0
    %178 = vmatpush.msra.mxu0 0.0
    %179 = vmatpush.msra.mxu0 0.0
    %180 = vmatpush.msra.mxu0 0.0
    %181 = vmatpush.msra.mxu0 0.0
    %182 = vmatpush.msra.mxu0 0.0
    %183 = vmatpush.msra.mxu0 0.0
    %184 = vmatpush.msra.mxu0 0.0
    %185 = vmatpush.msra.mxu0 0.0
    %186 = vmatpush.msra.mxu0 0.0
    %187 = vmatpush.msra.mxu0 0.0
    %188 = vmatpush.msra.mxu0 0.0
    %189 = vmatpush.msra.mxu0 0.0
    %190 = vmatpush.msra.mxu0 0.0
    %191 = vmatpush.msra.mxu0 %v175
    %192 = vmatpush.msra.mxu0 %v167
    %193 = vmatmul.f32.gmra.mxu0 %v171
    %v194 = vpop.f32.mrf.mxu0
    %v195 = vadd.f32 0.0, %v194
    %196 = vdwg.mxu0
    %v198 = vsel %vm169, %v95, 0
    %v201 = vsel %vm169, %v96, 0
    %203 = vmatpush.msra.mxu0 0.0
    %204 = vmatpush.msra.mxu0 0.0
    %205 = vmatpush.msra.mxu0 0.0
    %206 = vmatpush.msra.mxu0 0.0
    %207 = vmatpush.msra.mxu0 0.0
    %208 = vmatpush.msra.mxu0 0.0
    %209 = vmatpush.msra.mxu0 0.0
    %210 = vmatpush.msra.mxu0 0.0
    %211 = vmatpush.msra.mxu0 0.0
    %212 = vmatpush.msra.mxu0 0.0
    %213 = vmatpush.msra.mxu0 0.0
    %214 = vmatpush.msra.mxu0 0.0
    %215 = vmatpush.msra.mxu0 0.0
    %216 = vmatpush.msra.mxu0 0.0
    %217 = vmatpush.msra.mxu0 %v175
    %218 = vmatpush.msra.mxu0 %v167
    %219 = vmatmul.f32.gmra.mxu0 %v198
    %v220 = vpop.f32.mrf.mxu0
    %v221 = vadd.f32 0.0, %v220
    %222 = vmatmul.f32.gmra.mxu0 %v201
    %v223 = vpop.f32.mrf.mxu0
    %v224 = vadd.f32 0.0, %v223
    %225 = vdwg.mxu0
    %v226 = vperm.slane %v166, 0
    %vm227 = vcmask 261120
    %v229 = vsel %vm227, %v221, 0
    %v232 = vsel %vm227, %v224, 0
    %234 = vmatpush.msra.mxu0 0.0
    %235 = vmatpush.msra.mxu0 0.0
    %236 = vmatpush.msra.mxu0 0.0
    %237 = vmatpush.msra.mxu0 0.0
    %238 = vmatpush.msra.mxu0 0.0
    %239 = vmatpush.msra.mxu0 0.0
    %240 = vmatpush.msra.mxu0 0.0
    %241 = vmatpush.msra.mxu0 0.0
    %242 = vmatpush.msra.mxu0 0.0
    %243 = vmatpush.msra.mxu0 0.0
    %244 = vmatpush.msra.mxu0 0.0
    %245 = vmatpush.msra.mxu0 0.0
    %246 = vmatpush.msra.mxu0 %v144
    %247 = vmatpush.msra.mxu0 %v143
    %248 = vmatpush.msra.mxu0 %v142
    %249 = vmatpush.msra.mxu0 %v141
    %250 = vmatmul.f32.gmra.mxu0 %v229
    %v251 = vpop.f32.mrf.mxu0
    %v252 = vadd.f32 %v226, %v251
    %253 = vmatmul.f32.gmra.mxu0 %v232
    %v254 = vpop.f32.mrf.mxu0
    %v255 = vadd.f32 %v226, %v254
    %256 = vdwg.mxu0
    %v257 = vmax.f32 %v252, 0.0
    %v258 = vmax.f32 %v255, 0.0
    %v259 = vadd.f32 %v167, %v257
    %v260 = vadd.f32 %v168, %v258
    %v262 = vsel %vm173, %v260, 0
    %264 = vmatpush.msra.mxu0 0.0
    %265 = vmatpush.msra.mxu0 0.0
    %266 = vmatpush.msra.mxu0 0.0
    %267 = vmatpush.msra.mxu0 0.0
    %268 = vmatpush.msra.mxu0 0.0
    %269 = vmatpush.msra.mxu0 0.0
    %270 = vmatpush.msra.mxu0 0.0
    %271 = vmatpush.msra.mxu0 0.0
    %272 = vmatpush.msra.mxu0 0.0
    %273 = vmatpush.msra.mxu0 0.0
    %274 = vmatpush.msra.mxu0 0.0
    %275 = vmatpush.msra.mxu0 0.0
    %276 = vmatpush.msra.mxu0 0.0
    %277 = vmatpush.msra.mxu0 0.0
    %278 = vmatpush.msra.mxu0 %v262
    %279 = vmatpush.msra.mxu0 %v259
    %280 = vmatmul.f32.gmra.mxu0 %v198
    %v281 = vpop.f32.mrf.mxu0
    %v282 = vadd.f32 0.0, %v281
    %283 = vmatmul.f32.gmra.mxu0 %v201
    %v284 = vpop.f32.mrf.mxu0
    %v285 = vadd.f32 0.0, %v284
    %286 = vdwg.mxu0
    %v287 = vperm.slane %v166, 1
    %v289 = vsel %vm227, %v282, 0
    %v292 = vsel %vm227, %v285, 0
    %294 = vmatpush.msra.mxu0 0.0
    %295 = vmatpush.msra.mxu0 0.0
    %296 = vmatpush.msra.mxu0 0.0
    %297 = vmatpush.msra.mxu0 0.0
    %298 = vmatpush.msra.mxu0 0.0
    %299 = vmatpush.msra.mxu0 0.0
    %300 = vmatpush.msra.mxu0 0.0
    %301 = vmatpush.msra.mxu0 0.0
    %302 = vmatpush.msra.mxu0 0.0
    %303 = vmatpush.msra.mxu0 0.0
    %304 = vmatpush.msra.mxu0 0.0
    %305 = vmatpush.msra.mxu0 0.0
    %306 = vmatpush.msra.mxu0 %v148
    %307 = vmatpush.msra.mxu0 %v147
    %308 = vmatpush.msra.mxu0 %v146
    %309 = vmatpush.msra.mxu0 %v145
    %310 = vmatmul.f32.gmra.mxu0 %v289
    %v311 = vpop.f32.mrf.mxu0
    %v312 = vadd.f32 %v287, %v311
    %313 = vmatmul.f32.gmra.mxu0 %v292
    %v314 = vpop.f32.mrf.mxu0
    %v315 = vadd.f32 %v287, %v314
    %316 = vdwg.mxu0
    %v317 = vmax.f32 %v312, 0.0
    %v318 = vmax.f32 %v315, 0.0
    %v319 = vadd.f32 %v259, %v317
    %v320 = vadd.f32 %v260, %v318
    %v321 = vld [vmem:[#allocation7] sm:$0x3]
    %vm322 = vcmask 15360
    %v324 = vsel %vm322, %v99, 0
    %v327 = vsel %vm322, %v100, 0
    %vm329 = vcmask 1041408
    %v331 = vsel %vm329, %v321, 0
    %333 = vmatpush.msra.mxu0 0.0
    %334 = vmatpush.msra.mxu0 0.0
    %335 = vmatpush.msra.mxu0 0.0
    %336 = vmatpush.msra.mxu0 0.0
    %337 = vmatpush.msra.mxu0 0.0
    %338 = vmatpush.msra.mxu0 0.0
    %339 = vmatpush.msra.mxu0 0.0
    %340 = vmatpush.msra.mxu0 0.0
    %341 = vmatpush.msra.mxu0 0.0
    %342 = vmatpush.msra.mxu0 0.0
    %343 = vmatpush.msra.mxu0 0.0
    %344 = vmatpush.msra.mxu0 0.0
    %345 = vmatpush.msra.mxu0 0.0
    %346 = vmatpush.msra.mxu0 0.0
    %347 = vmatpush.msra.mxu0 0.0
    %348 = vmatpush.msra.mxu0 %v331
    %349 = vmatmul.f32.gmra.mxu0 %v324
    %v350 = vpop.f32.mrf.mxu0
    %v351 = vadd.f32 0.0, %v350
    %352 = vmatmul.f32.gmra.mxu0 %v327
    %v353 = vpop.f32.mrf.mxu0
    %v354 = vadd.f32 0.0, %v353
    %355 = vdwg.mxu0
    %v357 = vsel %vm227, %v319, 0
    %v360 = vsel %vm227, %v320, 0
    %362 = vmatpush.msra.mxu0 0.0
    %363 = vmatpush.msra.mxu0 0.0
    %364 = vmatpush.msra.mxu0 0.0
    %365 = vmatpush.msra.mxu0 0.0
    %366 = vmatpush.msra.mxu0 0.0
    %367 = vmatpush.msra.mxu0 0.0
    %368 = vmatpush.msra.mxu0 0.0
    %369 = vmatpush.msra.mxu0 0.0
    %370 = vmatpush.msra.mxu0 0.0
    %371 = vmatpush.msra.mxu0 0.0
    %372 = vmatpush.msra.mxu0 0.0
    %373 = vmatpush.msra.mxu0 0.0
    %374 = vmatpush.msra.mxu0 %v108
    %375 = vmatpush.msra.mxu0 %v107
    %376 = vmatpush.msra.mxu0 %v106
    %377 = vmatpush.msra.mxu0 %v105
    %378 = vmatmul.f32.gmra.mxu0 %v357
    %v379 = vpop.f32.mrf.mxu0
    %v380 = vadd.f32 0.0, %v379
    %381 = vmatmul.f32.gmra.mxu0 %v360
    %v382 = vpop.f32.mrf.mxu0
    %v383 = vadd.f32 0.0, %v382
    %384 = vdwg.mxu0
    %v386 = vsel %vm227, %v351, 0
    %v389 = vsel %vm227, %v354, 0
    %391 = vmatpush.msra.mxu0 0.0
    %392 = vmatpush.msra.mxu0 0.0
    %393 = vmatpush.msra.mxu0 0.0
    %394 = vmatpush.msra.mxu0 0.0
    %395 = vmatpush.msra.mxu0 0.0
    %396 = vmatpush.msra.mxu0 0.0
    %397 = vmatpush.msra.mxu0 0.0
    %398 = vmatpush.msra.mxu0 0.0
    %399 = vmatpush.msra.mxu0 0.0
    %400 = vmatpush.msra.mxu0 0.0
    %401 = vmatpush.msra.mxu0 0.0
    %402 = vmatpush.msra.mxu0 0.0
    %403 = vmatpush.msra.mxu0 %v112
    %404 = vmatpush.msra.mxu0 %v111
    %405 = vmatpush.msra.mxu0 %v110
    %406 = vmatpush.msra.mxu0 %v109
    %407 = vmatmul.f32.gmra.mxu0 %v386
    %v408 = vpop.f32.mrf.mxu0
    %v409 = vadd.f32 0.0, %v408
    %410 = vmatmul.f32.gmra.mxu0 %v389
    %v411 = vpop.f32.mrf.mxu0
    %v412 = vadd.f32 0.0, %v411
    %413 = vdwg.mxu0
    %v414 = vmul.f32 %v380, %v409
    %v415 = vmul.f32 %v383, %v412
    %416 = vmatpush.msra.mxu0 %v164
    %417 = vmatpush.msra.mxu0 %v163
    %418 = vmatpush.msra.mxu0 %v162
    %419 = vmatpush.msra.mxu0 %v161
    %420 = vmatpush.msra.mxu0 %v160
    %421 = vmatpush.msra.mxu0 %v159
    %422 = vmatpush.msra.mxu0 %v158
    %423 = vmatpush.msra.mxu0 %v157
    %424 = vmatpush.msra.mxu0 %v156
    %425 = vmatpush.msra.mxu0 %v155
    %426 = vmatpush.msra.mxu0 %v154
    %427 = vmatpush.msra.mxu0 %v153
    %428 = vmatpush.msra.mxu0 %v152
    %429 = vmatpush.msra.mxu0 %v151
    %430 = vmatpush.msra.mxu0 %v150
    %431 = vmatpush.msra.mxu0 %v149
    %432 = vmatmul.f32.gmra.mxu0 %v414
    %v433 = vpop.f32.mrf.mxu0
    %v434 = vadd.f32 0.0, %v433
    %435 = vmatmul.f32.gmra.mxu0 %v415
    %v436 = vpop.f32.mrf.mxu0
    %v437 = vadd.f32 0.0, %v436
    %438 = vdwg.mxu0
    %v440 = vsel %vm322, %v434, 0
    %v443 = vsel %vm322, %v437, 0
    %v446 = vsel %vm329, %v103, 0
    %448 = vmatpush.msra.mxu0 0.0
    %449 = vmatpush.msra.mxu0 0.0
    %450 = vmatpush.msra.mxu0 0.0
    %451 = vmatpush.msra.mxu0 0.0
    %452 = vmatpush.msra.mxu0 0.0
    %453 = vmatpush.msra.mxu0 0.0
    %454 = vmatpush.msra.mxu0 0.0
    %455 = vmatpush.msra.mxu0 0.0
    %456 = vmatpush.msra.mxu0 0.0
    %457 = vmatpush.msra.mxu0 0.0
    %458 = vmatpush.msra.mxu0 0.0
    %459 = vmatpush.msra.mxu0 0.0
    %460 = vmatpush.msra.mxu0 0.0
    %461 = vmatpush.msra.mxu0 0.0
    %462 = vmatpush.msra.mxu0 0.0
    %463 = vmatpush.msra.mxu0 %v446
    %464 = vmatmul.f32.gmra.mxu0 %v440
    %v465 = vpop.f32.mrf.mxu0
    %v466 = vadd.f32 0.0, %v465
    %467 = vmatmul.f32.gmra.mxu0 %v443
    %v468 = vpop.f32.mrf.mxu0
    %v469 = vadd.f32 0.0, %v468
    %470 = vdwg.mxu0
    %vm471 = vcmp.gt.f32.partialorder %v101, 0.0
    %vm472 = vcmp.gt.f32.partialorder %v102, 0.0
    %v473 = vsel %vm471, %v466, -1e+30
    %v474 = vsel %vm472, %v469, -1e+30
    %vm475 = vcmask 31744
    %v476 = vsel %vm475, %v473, -inf
    %vm477 = vcmask 27648
    %v478 = vsel %vm477, %v474, -inf
    %v479 = vmax.f32 %v476, %v478
    %v480 = vrot.slane %v479, 4
    %v481 = vmax.f32 %v479, %v480
    %v482 = vrot.slane %v481, 2
    %v483 = vmax.f32 %v481, %v482
    %v484 = vrot.slane %v483, 1
    %v485 = vmax.f32 %v483, %v484
    %v486 = vmul.f32 %v101, %v485
    %v487 = vmul.f32 %v102, %v485
    %v489 = vsel %vm475, %v486, 0
    %v492 = vsel %vm475, %v487, 0
    %v495 = vsel %vm173, %v104, 0
    %497 = vmatpush.msra.mxu0 0.0
    %498 = vmatpush.msra.mxu0 0.0
    %499 = vmatpush.msra.mxu0 0.0
    %500 = vmatpush.msra.mxu0 0.0
    %501 = vmatpush.msra.mxu0 0.0
    %502 = vmatpush.msra.mxu0 0.0
    %503 = vmatpush.msra.mxu0 0.0
    %504 = vmatpush.msra.mxu0 0.0
    %505 = vmatpush.msra.mxu0 0.0
    %506 = vmatpush.msra.mxu0 0.0
    %507 = vmatpush.msra.mxu0 0.0
    %508 = vmatpush.msra.mxu0 0.0
    %509 = vmatpush.msra.mxu0 0.0
    %510 = vmatpush.msra.mxu0 0.0
    %511 = vmatpush.msra.mxu0 0.0
    %512 = vmatpush.msra.mxu0 %v495
    %513 = vmatmul.f32.gmra.mxu0 %v489
    %v514 = vpop.f32.mrf.mxu0
    %v515 = vadd.f32 0.0, %v514
    %516 = vmatmul.f32.gmra.mxu0 %v492
    %v517 = vpop.f32.mrf.mxu0
    %v518 = vadd.f32 0.0, %v517
    %519 = vdwg.mxu0
    %v520 = vsub.f32 %v434, %v515
    %v521 = vsub.f32 %v437, %v518
    %v522 = vmul.f32 %v520, 1.442695
    %v523 = vpow.pop %v522
    %v524 = vmul.f32 %v521, 1.442695
    %v525 = vpow.pop %v524
    %v527 = vsel %vm169, %v97, 0
    %v530 = vsel %vm173, %v525, 0
    %532 = vmatpush.msra.mxu0 0.0
    %533 = vmatpush.msra.mxu0 0.0
    %534 = vmatpush.msra.mxu0 0.0
    %535 = vmatpush.msra.mxu0 0.0
    %536 = vmatpush.msra.mxu0 0.0
    %537 = vmatpush.msra.mxu0 0.0
    %538 = vmatpush.msra.mxu0 0.0
    %539 = vmatpush.msra.mxu0 0.0
    %540 = vmatpush.msra.mxu0 0.0
    %541 = vmatpush.msra.mxu0 0.0
    %542 = vmatpush.msra.mxu0 0.0
    %543 = vmatpush.msra.mxu0 0.0
    %544 = vmatpush.msra.mxu0 0.0
    %545 = vmatpush.msra.mxu0 0.0
    %546 = vmatpush.msra.mxu0 %v530
    %547 = vmatpush.msra.mxu0 %v523
    %548 = vmatmul.f32.gmra.mxu0 %v527
    %v549 = vpop.f32.mrf.mxu0
    %v550 = vadd.f32 0.0, %v549
    %551 = vdwg.mxu0
    %v553 = vsel %vm329, %v550, 0
    %555 = vmatpush.msra.mxu0 0.0
    %556 = vmatpush.msra.mxu0 0.0
    %557 = vmatpush.msra.mxu0 0.0
    %558 = vmatpush.msra.mxu0 0.0
    %559 = vmatpush.msra.mxu0 0.0
    %560 = vmatpush.msra.mxu0 0.0
    %561 = vmatpush.msra.mxu0 0.0
    %562 = vmatpush.msra.mxu0 0.0
    %563 = vmatpush.msra.mxu0 0.0
    %564 = vmatpush.msra.mxu0 0.0
    %565 = vmatpush.msra.mxu0 0.0
    %566 = vmatpush.msra.mxu0 0.0
    %567 = vmatpush.msra.mxu0 0.0
    %568 = vmatpush.msra.mxu0 0.0
    %569 = vmatpush.msra.mxu0 0.0
    %570 = vmatpush.msra.mxu0 %v553
    %571 = vmatmul.f32.gmra.mxu0 %v324
    %v572 = vpop.f32.mrf.mxu0
    %v573 = vadd.f32 0.0, %v572
    %574 = vmatmul.f32.gmra.mxu0 %v327
    %v575 = vpop.f32.mrf.mxu0
    %v576 = vadd.f32 0.0, %v575
    %577 = vdwg.mxu0
    %v578 = vrcp.pop %v573
    %v579 = vrcp.pop %v576
    %v580 = vmul.f32 %v573, %v578
    %v581 = vmul.f32 %v576, %v579
    %v582 = vsub.f32 2.0, %v580
    %v583 = vsub.f32 2.0, %v581
    %v584 = vmul.f32 %v578, %v582
    %v585 = vmul.f32 %v579, %v583
    %v586 = vmul.f32 %v523, %v584
    %v587 = vmul.f32 %v525, %v585
    %v589 = vsel %vm322, %v586, 0
    %v592 = vsel %vm322, %v587, 0
    %v595 = vsel %vm329, %v165, 0
    %597 = vmatpush.msra.mxu0 0.0
    %598 = vmatpush.msra.mxu0 0.0
    %599 = vmatpush.msra.mxu0 0.0
    %600 = vmatpush.msra.mxu0 0.0
    %601 = vmatpush.msra.mxu0 0.0
    %602 = vmatpush.msra.mxu0 0.0
    %603 = vmatpush.msra.mxu0 0.0
    %604 = vmatpush.msra.mxu0 0.0
    %605 = vmatpush.msra.mxu0 0.0
    %606 = vmatpush.msra.mxu0 0.0
    %607 = vmatpush.msra.mxu0 0.0
    %608 = vmatpush.msra.mxu0 0.0
    %609 = vmatpush.msra.mxu0 0.0
    %610 = vmatpush.msra.mxu0 0.0
    %611 = vmatpush.msra.mxu0 0.0
    %612 = vmatpush.msra.mxu0 %v595
    %613 = vmatmul.f32.gmra.mxu0 %v589
    %v614 = vpop.f32.mrf.mxu0
    %v615 = vadd.f32 0.0, %v614
    %616 = vmatmul.f32.gmra.mxu0 %v592
    %v617 = vpop.f32.mrf.mxu0
    %v618 = vadd.f32 0.0, %v617
    %619 = vdwg.mxu0
    %v620 = vmul.f32 %v380, %v615
    %v621 = vmul.f32 %v383, %v618
    %622 = vmatpush.msra.mxu0 %v128
    %623 = vmatpush.msra.mxu0 %v127
    %624 = vmatpush.msra.mxu0 %v126
    %625 = vmatpush.msra.mxu0 %v125
    %626 = vmatpush.msra.mxu0 %v124
    %627 = vmatpush.msra.mxu0 %v123
    %628 = vmatpush.msra.mxu0 %v122
    %629 = vmatpush.msra.mxu0 %v121
    %630 = vmatpush.msra.mxu0 %v120
    %631 = vmatpush.msra.mxu0 %v119
    %632 = vmatpush.msra.mxu0 %v118
    %633 = vmatpush.msra.mxu0 %v117
    %634 = vmatpush.msra.mxu0 %v116
    %635 = vmatpush.msra.mxu0 %v115
    %636 = vmatpush.msra.mxu0 %v114
    %637 = vmatpush.msra.mxu0 %v113
    %638 = vmatmul.f32.gmra.mxu0 %v620
    %v639 = vpop.f32.mrf.mxu0
    %v640 = vadd.f32 %v319, %v639
    %641 = vmatmul.f32.gmra.mxu0 %v621
    %v642 = vpop.f32.mrf.mxu0
    %v643 = vadd.f32 %v320, %v642
    %644 = vdwg.mxu0
    %v645 = vsel %vm227, %v640, 0.0
    %646 = vadd.xlane.f32.xlu0 %v645
    %v647 = vpop.xlane.xlu0 %646
    %vm648 = vcmask 257024
    %v649 = vsel %vm648, %v643, 0.0
    %650 = vadd.xlane.f32.xlu0 %v649
    %v651 = vpop.xlane.xlu0 %650
    %v652 = vrcp.pop 32.0
    %v653 = vmul.f32 32.0, %v652
    %v654 = vsub.f32 1.0, %v653
    %v655 = vmul.f32 %v652, %v654
    %v656 = vadd.f32 %v652, %v655
    %vm657 = vweird.f32 %v652
    %v658 = vsel %vm657, %v652, %v656
    %v659 = vmul.f32 %v647, %v658
    %v660 = vmul.f32 %v651, %v658
    %v661 = vsub.f32 %v640, %v659
    %v662 = vsub.f32 %v643, %v660
    %v663 = vmul.f32 %v661, %v661
    %v664 = vmul.f32 %v662, %v662
    %v665 = vsel %vm227, %v663, 0.0
    %666 = vadd.xlane.f32.xlu0 %v665
    %v667 = vpop.xlane.xlu0 %666
    %v668 = vsel %vm648, %v664, 0.0
    %669 = vadd.xlane.f32.xlu0 %v668
    %v670 = vpop.xlane.xlu0 %669
    %v671 = vmul.f32 %v667, %v658
    %v672 = vmul.f32 %v670, %v658
    %v673 = vadd.f32 %v671, 1e-05
    %v674 = vadd.f32 %v672, 1e-05
    %v675 = vrsqrt.pop %v673
    %v676 = vmul.f32 %v675, %v673
    %v677 = vmul.f32 %v676, %v675
    %v678 = vmul.f32 0.5, %v677
    %v679 = vsub.f32 1.5, %v678
    %v680 = vmul.f32 %v675, %v679
    %vm681 = vweird.f32 %v673
    %vm682 = vweird.f32 %v675
    %vm683 = vmor %vm681, %vm682
    %v684 = vsel %vm683, %v675, %v680
    %v685 = vrsqrt.pop %v674
    %v686 = vmul.f32 %v685, %v674
    %v687 = vmul.f32 %v686, %v685
    %v688 = vmul.f32 0.5, %v687
    %v689 = vsub.f32 1.5, %v688
    %v690 = vmul.f32 %v685, %v689
    %vm691 = vweird.f32 %v674
    %vm692 = vweird.f32 %v685
    %vm693 = vmor %vm691, %vm692
    %v694 = vsel %vm693, %v685, %v690
    %v695 = vmul.f32 %v661, %v684
    %v696 = vmul.f32 %v662, %v694
    %v697 = vperm.slane %v166, 4
    %v698 = vmul.f32 %v695, %v697
    %v699 = vmul.f32 %v696, %v697
    %v700 = vperm.slane %v166, 5
    %v701 = vadd.f32 %v698, %v700
    %v702 = vadd.f32 %v699, %v700
    %v703 = vperm.slane %v166, 2
    %v705 = vsel %vm227, %v701, 0
    %v708 = vsel %vm227, %v702, 0
    %710 = vmatpush.msra.mxu0 0.0
    %711 = vmatpush.msra.mxu0 0.0
    %712 = vmatpush.msra.mxu0 0.0
    %713 = vmatpush.msra.mxu0 0.0
    %714 = vmatpush.msra.mxu0 0.0
    %715 = vmatpush.msra.mxu0 0.0
    %716 = vmatpush.msra.mxu0 0.0
    %717 = vmatpush.msra.mxu0 0.0
    %718 = vmatpush.msra.mxu0 0.0
    %719 = vmatpush.msra.mxu0 0.0
    %720 = vmatpush.msra.mxu0 0.0
    %721 = vmatpush.msra.mxu0 0.0
    %722 = vmatpush.msra.mxu0 %v132
    %723 = vmatpush.msra.mxu0 %v131
    %724 = vmatpush.msra.mxu0 %v130
    %725 = vmatpush.msra.mxu0 %v129
    %726 = vmatmul.f32.gmra.mxu0 %v705
    %v727 = vpop.f32.mrf.mxu0
    %v728 = vadd.f32 %v703, %v727
    %729 = vmatmul.f32.gmra.mxu0 %v708
    %v730 = vpop.f32.mrf.mxu0
    %v731 = vadd.f32 %v703, %v730
    %732 = vdwg.mxu0
    %v733 = vmax.f32 %v728, 0.0
    %v734 = vmax.f32 %v731, 0.0
    %v735 = vperm.slane %v166, 3
    %vm736 = vcmask 523264
    %v738 = vsel %vm736, %v733, 0
    %v741 = vsel %vm736, %v734, 0
    %743 = vmatpush.msra.mxu0 0.0
    %744 = vmatpush.msra.mxu0 0.0
    %745 = vmatpush.msra.mxu0 0.0
    %746 = vmatpush.msra.mxu0 0.0
    %747 = vmatpush.msra.mxu0 0.0
    %748 = vmatpush.msra.mxu0 0.0
    %749 = vmatpush.msra.mxu0 0.0
    %750 = vmatpush.msra.mxu0 0.0
    %751 = vmatpush.msra.mxu0 %v140
    %752 = vmatpush.msra.mxu0 %v139
    %753 = vmatpush.msra.mxu0 %v138
    %754 = vmatpush.msra.mxu0 %v137
    %755 = vmatpush.msra.mxu0 %v136
    %756 = vmatpush.msra.mxu0 %v135
    %757 = vmatpush.msra.mxu0 %v134
    %758 = vmatpush.msra.mxu0 %v133
    %759 = vmatmul.f32.gmra.mxu0 %v738
    %v760 = vpop.f32.mrf.mxu0
    %v761 = vadd.f32 %v735, %v760
    %762 = vmatmul.f32.gmra.mxu0 %v741
    %v763 = vpop.f32.mrf.mxu0
    %v764 = vadd.f32 %v735, %v763
    %765 = vdwg.mxu0
    %v766 = vadd.f32 %v761, %v701
    %v767 = vadd.f32 %v764, %v702
    %v768 = vsel %vm227, %v766, 0.0
    %769 = vadd.xlane.f32.xlu0 %v768
    %v770 = vpop.xlane.xlu0 %769
    %v771 = vsel %vm648, %v767, 0.0
    %772 = vadd.xlane.f32.xlu0 %v771
    %v773 = vpop.xlane.xlu0 %772
    %v774 = vmul.f32 %v770, %v658
    %v775 = vmul.f32 %v773, %v658
    %v776 = vsub.f32 %v766, %v774
    %v777 = vsub.f32 %v767, %v775
    %v778 = vmul.f32 %v776, %v776
    %v779 = vmul.f32 %v777, %v777
    %v780 = vsel %vm227, %v778, 0.0
    %781 = vadd.xlane.f32.xlu0 %v780
    %v782 = vpop.xlane.xlu0 %781
    %v783 = vsel %vm648, %v779, 0.0
    %784 = vadd.xlane.f32.xlu0 %v783
    %v785 = vpop.xlane.xlu0 %784
    %v786 = vmul.f32 %v782, %v658
    %v787 = vmul.f32 %v785, %v658
    %v788 = vadd.f32 %v786, 1e-05
    %v789 = vadd.f32 %v787, 1e-05
    %v790 = vrsqrt.pop %v788
    %v791 = vmul.f32 %v790, %v788
    %v792 = vmul.f32 %v791, %v790
    %v793 = vmul.f32 0.5, %v792
    %v794 = vsub.f32 1.5, %v793
    %v795 = vmul.f32 %v790, %v794
    %vm796 = vweird.f32 %v788
    %vm797 = vweird.f32 %v790
    %vm798 = vmor %vm796, %vm797
    %v799 = vsel %vm798, %v790, %v795
    %v800 = vrsqrt.pop %v789
    %v801 = vmul.f32 %v800, %v789
    %v802 = vmul.f32 %v801, %v800
    %v803 = vmul.f32 0.5, %v802
    %v804 = vsub.f32 1.5, %v803
    %v805 = vmul.f32 %v800, %v804
    %vm806 = vweird.f32 %v789
    %vm807 = vweird.f32 %v800
    %vm808 = vmor %vm806, %vm807
    %v809 = vsel %vm808, %v800, %v805
    %v810 = vmul.f32 %v776, %v799
    %v811 = vmul.f32 %v777, %v809
    %v812 = vmul.f32 %v810, %v697
    %v813 = vmul.f32 %v811, %v697
    %v814 = vadd.f32 %v812, %v700
    %v815 = vadd.f32 %v813, %v700
    %816 = vst [vmem:[#allocation11] sm:$0xff] 0.0
    %817 = vst [vmem:[#allocation11 + $0x8] sm:$0xff] 0.0
    %v819 = vsel %vm173, %v815, 0
    %821 = vmatpush.msra.mxu0 0.0
    %822 = vmatpush.msra.mxu0 0.0
    %823 = vmatpush.msra.mxu0 0.0
    %824 = vmatpush.msra.mxu0 0.0
    %825 = vmatpush.msra.mxu0 0.0
    %826 = vmatpush.msra.mxu0 0.0
    %827 = vmatpush.msra.mxu0 0.0
    %828 = vmatpush.msra.mxu0 0.0
    %829 = vmatpush.msra.mxu0 0.0
    %830 = vmatpush.msra.mxu0 0.0
    %831 = vmatpush.msra.mxu0 0.0
    %832 = vmatpush.msra.mxu0 0.0
    %833 = vmatpush.msra.mxu0 0.0
    %834 = vmatpush.msra.mxu0 0.0
    %835 = vmatpush.msra.mxu0 %v819
    %836 = vmatpush.msra.mxu0 %v814
    %837 = vmatmul.f32.gmra.mxu0 %v527
    %v838 = vpop.f32.mrf.mxu0
    %v839 = vadd.f32 0.0, %v838
    %840 = vdwg.mxu0
    %vm841 = vcmask 254976
    %842 = vst.msk [vmem:[#allocation11] sm:$0x3] %vm841, %v839
    %843 = vst.msk [vmem:[#allocation11 + $0x2] sm:$0x3] %vm841, %v195
    %844 = vrot.lane.b32.xlu0 %v586, 127
    %v845 = vpop.permute.xlu0 %844
    %846 = vrot.lane.b32.xlu0 %v587, 127
    %v847 = vpop.permute.xlu0 %846
    %vm850 = vcmask 7168
    %851 = vst.msk [vmem:[#allocation11 + $0x4] sm:$0xff] %vm850, %v845
    %vm852 = vcmask 3072
    %853 = vst.msk [vmem:[#allocation11 + $0xc] sm:$0xf] %vm852, %v847
    // Predicated region
    $region42: #{tpu_custom_call.1} parent=1 // pred_check
      _
    $region43: #{tpu_custom_call.1} parent=1 // pred_check_branch
      %855 = sbr.rel (0) target = $region45
    $region44: #{tpu_custom_call.1} parent=1 // pred_region
      %857 = vsyncadd [#allocation4], 0
      %s858 = sshll.u32 [#allocation11], 4
      %s859 = int_to_ptr.vmem [resolvable:$true] %s858
      %s860 = sshll.u32 %s5, 4
      %s861 = int_to_ptr.hbm [resolvable:$true] %s860
      %866 = dma.vmem_to_hbm [thread:$0]  %s859, 256, %s861, [#allocation4], 128, 128, 8
    $region45: #{tpu_custom_call.1} parent=1 // pred_fallthru
      _
    // Predicated region
    $region46: #{tpu_custom_call.1} parent=1 // pred_check
      _
    $region47: #{tpu_custom_call.1} parent=1 // pred_check_branch
      %868 = sbr.rel (0) target = $region49
    $region48: #{tpu_custom_call.1} parent=1 // pred_region
      %870 = dma.done [#allocation4], 256
    $region49: #{tpu_custom_call.1} parent=1 // pred_fallthru
      _
    %871 = vsyncpa [#allocation3], 1
    %872 = vsyncpa [#allocation6], 1
    %873 = vsyncpa [#allocation9], 1
    %874 = vsyncpa [#allocation4], 1

</llo_original>
